<compile_context>
chip_gen: v7x
topology: tpu7x:2x2x1
jax: 0.10.0
libtpu: 0.0.40
codegen_flags: <defaults>
</compile_context>

<pallas_src>
import jax
import jax.numpy as jnp
from jax.experimental import pallas as pl
from jax.experimental.pallas import tpu as pltpu


def _round_up(x, m):
    return (x + m - 1) // m * m


def gin_kernel(eps_ref, adj_ref, xk_ref, xi_ref, w1_ref, b1_ref, w2_ref, b2_ref,
               o_ref, acc_ref):
    k = pl.program_id(1)

    @pl.when(k == 0)
    def _():
        acc_ref[...] = jnp.zeros_like(acc_ref)

    # Sum aggregation: acc[i, :] += sum_j A[i, j] * x[j, :]  (bf16 MXU, f32 acc)
    acc_ref[...] += jnp.dot(adj_ref[...], xk_ref[...],
                            preferred_element_type=jnp.float32)

    @pl.when(k == pl.num_programs(1) - 1)
    def _():
        # Self term (1 + eps) * x kept in f32, then MLP updater + activations.
        h = acc_ref[...] + (1.0 + eps_ref[0, 0]) * xi_ref[...]
        h1 = jnp.dot(h, w1_ref[...], preferred_element_type=jnp.float32) + b1_ref[...]
        h1 = jnp.maximum(h1, 0.0)
        h2 = jnp.dot(h1, w2_ref[...], preferred_element_type=jnp.float32) + b2_ref[...]
        # Wrapper activation (ReLU); dropout_value == 0.0 -> no dropout.
        o_ref[...] = jnp.maximum(h2, 0.0)


def gin_wrapper_forward(x, edge_index, w1, b1, w2, b2, eps):
    """x: [N, in_dim] f32, edge_index: [2, E] int32 (row 0 = src, row 1 = dst),
    w1: [in_dim, out_dim], b1: [1, out_dim], w2: [out_dim, out_dim],
    b2: [1, out_dim], eps: scalar (learnable GIN epsilon)."""
    n, in_dim = x.shape
    out_dim = w2.shape[1]

    # Lane-dense padding: feature dims to multiples of 128; node dim to a
    # multiple of 128 so the row/K tiles divide evenly.
    n_pad = _round_up(max(n, 128), 128)
    f_pad = _round_up(in_dim, 128)
    o_pad = _round_up(out_dim, 128)

    # --- wrapper glue: densify the scatter-add into adjacency A[dst, src] += 1.
    src, dst = edge_index[0], edge_index[1]
    adj = jnp.zeros((n_pad, n_pad), jnp.float32).at[dst, src].add(1.0)
    adj_bf16 = adj.astype(jnp.bfloat16)          # small integer counts: exact

    x_pad = jnp.zeros((n_pad, f_pad), jnp.float32).at[:n, :in_dim].set(x)
    x_bf16 = x_pad.astype(jnp.bfloat16)          # bf16 MXU operand for A @ x

    w1_p = jnp.zeros((f_pad, o_pad), jnp.float32).at[:in_dim, :out_dim].set(w1)
    b1_p = jnp.zeros((1, o_pad), jnp.float32).at[:, :out_dim].set(b1)
    w2_p = jnp.zeros((o_pad, o_pad), jnp.float32).at[:out_dim, :out_dim].set(w2)
    b2_p = jnp.zeros((1, o_pad), jnp.float32).at[:, :out_dim].set(b2)
    eps_arr = jnp.reshape(jnp.asarray(eps, jnp.float32), (1, 1))

    # Tile sizes: multiples of 128 that divide n_pad (MXU-shaped, VMEM-safe).
    tm = 256 if n_pad % 256 == 0 else 128                       # node-row tile
    tk = 512 if n_pad % 512 == 0 else (256 if n_pad % 256 == 0 else 128)
    grid = (n_pad // tm, n_pad // tk)

    out = pl.pallas_call(
        gin_kernel,
        out_shape=jax.ShapeDtypeStruct((n_pad, o_pad), jnp.float32),
        grid=grid,
        in_specs=[
            pl.BlockSpec((1, 1), lambda i, k: (0, 0)),           # eps (resident)
            pl.BlockSpec((tm, tk), lambda i, k: (i, k)),         # adjacency tile
            pl.BlockSpec((tk, f_pad), lambda i, k: (k, 0)),      # x  (K tile, bf16)
            pl.BlockSpec((tm, f_pad), lambda i, k: (i, 0)),      # x  (row tile, f32)
            pl.BlockSpec((f_pad, o_pad), lambda i, k: (0, 0)),   # W1 (resident)
            pl.BlockSpec((1, o_pad), lambda i, k: (0, 0)),       # b1 (resident)
            pl.BlockSpec((o_pad, o_pad), lambda i, k: (0, 0)),   # W2 (resident)
            pl.BlockSpec((1, o_pad), lambda i, k: (0, 0)),       # b2 (resident)
        ],
        out_specs=pl.BlockSpec((tm, o_pad), lambda i, k: (i, 0)),
        scratch_shapes=[pltpu.VMEM((tm, f_pad), jnp.float32)],   # f32 accumulator
        compiler_params=pltpu.CompilerParams(
            dimension_semantics=("parallel", "arbitrary"),
            vmem_limit_bytes=48 * 1024 * 1024,
        ),
    )(eps_arr, adj_bf16, x_bf16, x_pad, w1_p, b1_p, w2_p, b2_p)

    return out[:n, :out_dim]


if __name__ == "__main__":
    # Small, deterministic synthetic problem.
    N, E = 16, 48            # nodes, edges
    IN_DIM, OUT_DIM = 16, 32
    EPS = 0.1

    key = jax.random.PRNGKey(0)
    k_x, k_e, k_w1, k_b1, k_w2, k_b2 = jax.random.split(key, 6)

    x = jax.random.normal(k_x, (N, IN_DIM), dtype=jnp.float32)
    edge_index = jax.random.randint(k_e, (2, E), 0, N, dtype=jnp.int32)

    # torch.nn.Linear weights stored pre-transposed as [in, out] so kernel does x @ W.
    w1 = (jax.random.normal(k_w1, (IN_DIM, OUT_DIM), dtype=jnp.float32)
          / jnp.sqrt(IN_DIM))
    b1 = jax.random.normal(k_b1, (1, OUT_DIM), dtype=jnp.float32) * 0.01
    w2 = (jax.random.normal(k_w2, (OUT_DIM, OUT_DIM), dtype=jnp.float32)
          / jnp.sqrt(OUT_DIM))
    b2 = jax.random.normal(k_b2, (1, OUT_DIM), dtype=jnp.float32) * 0.01
    eps = jnp.float32(EPS)

    out = gin_wrapper_forward(x, edge_index, w1, b1, w2, b2, eps)
    jax.block_until_ready(out)

    # Pure-JAX reference of the same math (mirrors the kernel's bf16 cast of the
    # aggregation operands; self term and MLP stay f32).
    adj = jnp.zeros((N, N), jnp.float32).at[edge_index[1], edge_index[0]].add(1.0)
    adj_q = adj.astype(jnp.bfloat16).astype(jnp.float32)   # exact (integer counts)
    x_q = x.astype(jnp.bfloat16).astype(jnp.float32)
    h = adj_q @ x_q + (1.0 + EPS) * x
    ref = jnp.maximum(jnp.maximum(h @ w1 + b1, 0.0) @ w2 + b2, 0.0)

    assert out.shape == (N, OUT_DIM)
    assert jnp.allclose(out, ref, atol=5e-4, rtol=5e-4), (
        "max abs err = %f" % float(jnp.max(jnp.abs(out - ref))))

    print("KERNEL_OK")
</pallas_src>

<mosaic_0001>
module attributes {stable_mosaic.version = 11 : i64} {
  func.func @gin_kernel(%arg0: i32, %arg1: i32, %arg2: memref<1x1xf32, #tpu.memory_space<vmem>>, %arg3: memref<128x128xbf16, #tpu.memory_space<vmem>>, %arg4: memref<128x128xbf16, #tpu.memory_space<vmem>>, %arg5: memref<128x128xf32, #tpu.memory_space<vmem>>, %arg6: memref<128x128xf32, #tpu.memory_space<vmem>>, %arg7: memref<1x128xf32, #tpu.memory_space<vmem>>, %arg8: memref<128x128xf32, #tpu.memory_space<vmem>>, %arg9: memref<1x128xf32, #tpu.memory_space<vmem>>, %arg10: memref<128x128xf32, #tpu.memory_space<vmem>>, %arg11: memref<128x128xf32, #tpu.memory_space<vmem>>) attributes {dimension_semantics = [#tpu.dimension_semantics<parallel>, #tpu.dimension_semantics<arbitrary>], iteration_bounds = array<i64: 1, 1>, scalar_prefetch = 0 : i64, scratch_operands = 1 : i64, tpu.core_type = #tpu.core_type<tc>, window_params = [{pipeline_mode = #tpu.pipeline_mode<synchronous>, transform_indices = @transform_0, window_bounds = array<i64: 1, 1>}, {transform_indices = @transform_1, window_bounds = array<i64: 128, 128>}, {transform_indices = @transform_2, window_bounds = array<i64: 128, 128>}, {transform_indices = @transform_3, window_bounds = array<i64: 128, 128>}, {pipeline_mode = #tpu.pipeline_mode<synchronous>, transform_indices = @transform_4, window_bounds = array<i64: 128, 128>}, {pipeline_mode = #tpu.pipeline_mode<synchronous>, transform_indices = @transform_5, window_bounds = array<i64: 1, 128>}, {pipeline_mode = #tpu.pipeline_mode<synchronous>, transform_indices = @transform_6, window_bounds = array<i64: 128, 128>}, {pipeline_mode = #tpu.pipeline_mode<synchronous>, transform_indices = @transform_7, window_bounds = array<i64: 1, 128>}, {transform_indices = @transform_8, window_bounds = array<i64: 128, 128>}]} {
    %c0_i32 = arith.constant 0 : i32
    %0 = arith.cmpi eq, %arg1, %c0_i32 : i32
    %1 = arith.extui %0 : i1 to i32
    %c0_i32_0 = arith.constant 0 : i32
    %2 = arith.cmpi ne, %1, %c0_i32_0 : i32
    scf.if %2 {
      %cst_10 = arith.constant 0.000000e+00 : f32
      %12 = vector.broadcast %cst_10 : f32 to vector<128x128xf32>
      %c0_11 = arith.constant 0 : index
      %c0_12 = arith.constant 0 : index
      %13 = vector.load %arg11[%c0_11, %c0_12] : memref<128x128xf32, #tpu.memory_space<vmem>>, vector<128x128xf32>
      tpu.vector_store %arg11[%c0_11, %c0_12], %12 {strides = array<i32>} : memref<128x128xf32, #tpu.memory_space<vmem>>, vector<128x128xf32>,
    } else {
    }
    %c0 = arith.constant 0 : index
    %c0_1 = arith.constant 0 : index
    %3 = vector.load %arg11[%c0, %c0_1] : memref<128x128xf32, #tpu.memory_space<vmem>>, vector<128x128xf32>
    %c0_2 = arith.constant 0 : index
    %c0_3 = arith.constant 0 : index
    %4 = vector.load %arg3[%c0_2, %c0_3] : memref<128x128xbf16, #tpu.memory_space<vmem>>, vector<128x128xbf16>
    %c0_4 = arith.constant 0 : index
    %c0_5 = arith.constant 0 : index
    %5 = vector.load %arg4[%c0_4, %c0_5] : memref<128x128xbf16, #tpu.memory_space<vmem>>, vector<128x128xbf16>
    %cst = arith.constant dense<0.000000e+00> : vector<128x128xf32>
    %6 = tpu.matmul %4, %5, %cst {dimension_numbers = #tpu.dot_dimension_numbers<[1], [0], [0], [1], [0, 0, 1, 1], [], []>} : vector<128x128xbf16>, vector<128x128xbf16>, vector<128x128xf32> -> vector<128x128xf32>
    %7 = arith.addf %3, %6 : vector<128x128xf32>
    %c0_6 = arith.constant 0 : index
    %c0_7 = arith.constant 0 : index
    %8 = vector.load %arg11[%c0_6, %c0_7] : memref<128x128xf32, #tpu.memory_space<vmem>>, vector<128x128xf32>
    tpu.vector_store %arg11[%c0_6, %c0_7], %7 {strides = array<i32>} : memref<128x128xf32, #tpu.memory_space<vmem>>, vector<128x128xf32>,
    %c0_i32_8 = arith.constant 0 : i32
    %9 = arith.cmpi eq, %arg1, %c0_i32_8 : i32
    %10 = arith.extui %9 : i1 to i32
    %c0_i32_9 = arith.constant 0 : i32
    %11 = arith.cmpi ne, %10, %c0_i32_9 : i32
    scf.if %11 {
      %c0_10 = arith.constant 0 : index
      %c0_11 = arith.constant 0 : index
      %12 = vector.load %arg11[%c0_10, %c0_11] : memref<128x128xf32, #tpu.memory_space<vmem>>, vector<128x128xf32>
      %c0_12 = arith.constant 0 : index
      %c0_13 = arith.constant 0 : index
      %13 = vector.load %arg2[%c0_12, %c0_13] : memref<1x1xf32, #tpu.memory_space<vmem>>, vector<1x1xf32>
      %14 = vector.extract %13[0, 0] : f32 from vector<1x1xf32>
      %cst_14 = arith.constant 1.000000e+00 : f32
      %15 = arith.addf %cst_14, %14 : f32
      %c0_15 = arith.constant 0 : index
      %c0_16 = arith.constant 0 : index
      %16 = vector.load %arg5[%c0_15, %c0_16] : memref<128x128xf32, #tpu.memory_space<vmem>>, vector<128x128xf32>
      %17 = vector.broadcast %15 : f32 to vector<128x128xf32>
      %18 = arith.mulf %17, %16 : vector<128x128xf32>
      %19 = arith.addf %12, %18 : vector<128x128xf32>
      %c0_17 = arith.constant 0 : index
      %c0_18 = arith.constant 0 : index
      %20 = vector.load %arg6[%c0_17, %c0_18] : memref<128x128xf32, #tpu.memory_space<vmem>>, vector<128x128xf32>
      %cst_19 = arith.constant dense<0.000000e+00> : vector<128x128xf32>
      %21 = tpu.matmul %19, %20, %cst_19 {dimension_numbers = #tpu.dot_dimension_numbers<[1], [0], [0], [1], [0, 0, 1, 1], [], []>} : vector<128x128xf32>, vector<128x128xf32>, vector<128x128xf32> -> vector<128x128xf32>
      %c0_20 = arith.constant 0 : index
      %c0_21 = arith.constant 0 : index
      %22 = vector.load %arg7[%c0_20, %c0_21] : memref<1x128xf32, #tpu.memory_space<vmem>>, vector<1x128xf32>
      %23 = vector.broadcast %22 : vector<1x128xf32> to vector<128x128xf32>
      %24 = arith.addf %21, %23 : vector<128x128xf32>
      %cst_22 = arith.constant 0.000000e+00 : f32
      %25 = vector.broadcast %cst_22 : f32 to vector<128x128xf32>
      %26 = arith.maximumf %24, %25 : vector<128x128xf32>
      %c0_23 = arith.constant 0 : index
      %c0_24 = arith.constant 0 : index
      %27 = vector.load %arg8[%c0_23, %c0_24] : memref<128x128xf32, #tpu.memory_space<vmem>>, vector<128x128xf32>
      %cst_25 = arith.constant dense<0.000000e+00> : vector<128x128xf32>
      %28 = tpu.matmul %26, %27, %cst_25 {dimension_numbers = #tpu.dot_dimension_numbers<[1], [0], [0], [1], [0, 0, 1, 1], [], []>} : vector<128x128xf32>, vector<128x128xf32>, vector<128x128xf32> -> vector<128x128xf32>
      %c0_26 = arith.constant 0 : index
      %c0_27 = arith.constant 0 : index
      %29 = vector.load %arg9[%c0_26, %c0_27] : memref<1x128xf32, #tpu.memory_space<vmem>>, vector<1x128xf32>
      %30 = vector.broadcast %29 : vector<1x128xf32> to vector<128x128xf32>
      %31 = arith.addf %28, %30 : vector<128x128xf32>
      %cst_28 = arith.constant 0.000000e+00 : f32
      %32 = vector.broadcast %cst_28 : f32 to vector<128x128xf32>
      %33 = arith.maximumf %31, %32 : vector<128x128xf32>
      %c0_29 = arith.constant 0 : index
      %c0_30 = arith.constant 0 : index
      %34 = vector.load %arg10[%c0_29, %c0_30] : memref<128x128xf32, #tpu.memory_space<vmem>>, vector<128x128xf32>
      tpu.vector_store %arg10[%c0_29, %c0_30], %33 {strides = array<i32>} : memref<128x128xf32, #tpu.memory_space<vmem>>, vector<128x128xf32>,
    } else {
    }
    return
  }
  func.func @transform_0(%arg0: i32, %arg1: i32) -> (i32, i32) {
    %c0_i32 = arith.constant 0 : i32
    %c0_i32_0 = arith.constant 0 : i32
    %c0_i32_1 = arith.constant 0 : i32
    return %c0_i32, %c0_i32_0 : i32, i32
  }
  func.func @transform_1(%arg0: i32, %arg1: i32) -> (i32, i32) {
    %c0_i32 = arith.constant 0 : i32
    return %arg0, %arg1 : i32, i32
  }
  func.func @transform_2(%arg0: i32, %arg1: i32) -> (i32, i32) {
    %c0_i32 = arith.constant 0 : i32
    %c0_i32_0 = arith.constant 0 : i32
    return %arg1, %c0_i32 : i32, i32
  }
  func.func @transform_3(%arg0: i32, %arg1: i32) -> (i32, i32) {
    %c0_i32 = arith.constant 0 : i32
    %c0_i32_0 = arith.constant 0 : i32
    return %arg0, %c0_i32 : i32, i32
  }
  func.func @transform_4(%arg0: i32, %arg1: i32) -> (i32, i32) {
    %c0_i32 = arith.constant 0 : i32
    %c0_i32_0 = arith.constant 0 : i32
    %c0_i32_1 = arith.constant 0 : i32
    return %c0_i32, %c0_i32_0 : i32, i32
  }
  func.func @transform_5(%arg0: i32, %arg1: i32) -> (i32, i32) {
    %c0_i32 = arith.constant 0 : i32
    %c0_i32_0 = arith.constant 0 : i32
    %c0_i32_1 = arith.constant 0 : i32
    return %c0_i32, %c0_i32_0 : i32, i32
  }
  func.func @transform_6(%arg0: i32, %arg1: i32) -> (i32, i32) {
    %c0_i32 = arith.constant 0 : i32
    %c0_i32_0 = arith.constant 0 : i32
    %c0_i32_1 = arith.constant 0 : i32
    return %c0_i32, %c0_i32_0 : i32, i32
  }
  func.func @transform_7(%arg0: i32, %arg1: i32) -> (i32, i32) {
    %c0_i32 = arith.constant 0 : i32
    %c0_i32_0 = arith.constant 0 : i32
    %c0_i32_1 = arith.constant 0 : i32
    return %c0_i32, %c0_i32_0 : i32, i32
  }
  func.func @transform_8(%arg0: i32, %arg1: i32) -> (i32, i32) {
    %c0_i32 = arith.constant 0 : i32
    %c0_i32_0 = arith.constant 0 : i32
    return %arg0, %c0_i32 : i32, i32
  }
}

</mosaic_0001>

<llo_original>
// kernel: tpu_custom_call.1
$region0: #{tpu_custom_call.1}
  #allocation0 [shape = 'u32[]', space=smem, size = 0x4, offset = 0x4, fixed_abs, tag = 'smem constant byte address 0x4 - core index']
  #allocation1 [shape = 'u32[144,128]{1,0:T(1,128)}', space=vmem, size = 0x12000, scoped, tag = 'internal scratch']
  #allocation2 [shape = 'f32[128,128]{1,0:T(8,128)}', space=vmem, size = 0x10000, scoped, tag = 'scratch operand']
  #allocation3 [shape = 'f32[1,1]{1,0:T(1,128)S(1)}', space=vmem, size = 0x200, scoped, tag = 'scoped memory for tpu_custom_call.1']
  %s0 = inlined_call_operand.<no memory space> [shape: f32[1,1], index: 0, kind: input, shape index: {}]
  %s1 = inlined_call_operand.hbm [shape: bf16[128,128], index: 1, kind: input, shape index: {}]
  %s2 = inlined_call_operand.hbm [shape: bf16[128,128], index: 2, kind: input, shape index: {}]
  %s3 = inlined_call_operand.hbm [shape: f32[128,128], index: 3, kind: input, shape index: {}]
  %s4 = inlined_call_operand.hbm [shape: f32[128,128], index: 4, kind: input, shape index: {}]
  %s5 = inlined_call_operand.vmem [shape: f32[1,128], index: 5, kind: input, shape index: {}]
  %s6 = inlined_call_operand.hbm [shape: f32[128,128], index: 6, kind: input, shape index: {}]
  %s7 = inlined_call_operand.vmem [shape: f32[1,128], index: 7, kind: input, shape index: {}]
  %s8 = inlined_call_operand.hbm [shape: f32[128,128], index: 8, kind: output, shape index: {}]
  %s9 = sld [smem:[#allocation0]]
  $region70: #{tpu_custom_call.1} parent=0
    _
  %s11 = ssub.s32 1, %s9
  %s12 = scalar_select 0, %s11, %s9
  %v13 = vstv %s0
  %14 = vst [vmem:[#allocation3] sm:$0x1] %v13
  $region1: #{tpu_custom_call.1} parent=0
    #allocation4 [shape = 'u8[32768]{0}', space=vmem, size = 0x8000, scoped, tag = 'input window, operand 1, single buffered']
    #allocation5 [shape = 's32[1]{0}', space=sflag, size = 0x4, scoped, tag = 'scoped memory for tpu_custom_call.1']
    #allocation6 [shape = 's32[1]{0}', space=sflag, size = 0x4, scoped, tag = 'scoped memory for tpu_custom_call.1']
    #allocation7 [shape = 'u8[32768]{0}', space=vmem, size = 0x8000, scoped, tag = 'input window, operand 2, single buffered']
    #allocation8 [shape = 's32[1]{0}', space=sflag, size = 0x4, scoped, tag = 'scoped memory for tpu_custom_call.1']
    #allocation9 [shape = 'u8[65536]{0}', space=vmem, size = 0x10000, scoped, tag = 'input window, operand 3, single buffered']
    #allocation10 [shape = 'u8[65536]{0}', space=vmem, size = 0x10000, scoped, tag = 'input window, operand 4, single buffered']
    #allocation11 [shape = 's32[1]{0}', space=sflag, size = 0x4, scoped, tag = 'scoped memory for tpu_custom_call.1']
    #allocation12 [shape = 'u8[65536]{0}', space=vmem, size = 0x10000, scoped, tag = 'input window, operand 6, single buffered']
    #allocation13 [shape = 'u8[65536]{0}', space=vmem, size = 0x10000, scoped, tag = 'output window, operand 0, single buffered']
    %15 = vsyncpa [#allocation5], 0
    %16 = vsyncpa [#allocation8], 0
    %17 = vsyncpa [#allocation11], 0
    %18 = vsyncpa [#allocation6], 0
    // Predicated region
    $region2: #{tpu_custom_call.1} parent=1 // pred_check
      _
    $region3: #{tpu_custom_call.1} parent=1 // pred_check_branch
      %20 = sbr.rel (0) target = $region5
    $region4: #{tpu_custom_call.1} parent=1 // pred_region
      _
    $region5: #{tpu_custom_call.1} parent=1 // pred_fallthru
      _
    // Predicated region
    $region6: #{tpu_custom_call.1} parent=1 // pred_check
      _
    $region7: #{tpu_custom_call.1} parent=1 // pred_check_branch
      %22 = sbr.rel (0) target = $region9
    $region8: #{tpu_custom_call.1} parent=1 // pred_region
      %s24 = ssub.s32 1024, 1024
      %25 = vsyncadd [#allocation5], %s24
      %s26 = sshll.u32 [#allocation4], 4
      %s27 = int_to_ptr.vmem [resolvable:$true] %s26
      %32 = dma.hbm_to_vmem [thread:$0]  %s1, 1024, %s27, [#allocation5], 64, 64, 4
    $region9: #{tpu_custom_call.1} parent=1 // pred_fallthru
      _
    // Predicated region
    $region10: #{tpu_custom_call.1} parent=1 // pred_check
      _
    $region11: #{tpu_custom_call.1} parent=1 // pred_check_branch
      %34 = sbr.rel (0) target = $region13
    $region12: #{tpu_custom_call.1} parent=1 // pred_region
      %s36 = ssub.s32 1024, 1024
      %37 = vsyncadd [#allocation8], %s36
      %s38 = sshll.u32 [#allocation7], 4
      %s39 = int_to_ptr.vmem [resolvable:$true] %s38
      %44 = dma.hbm_to_vmem [thread:$0]  %s2, 1024, %s39, [#allocation8], 64, 64, 4
    $region13: #{tpu_custom_call.1} parent=1 // pred_fallthru
      _
    // Predicated region
    $region14: #{tpu_custom_call.1} parent=1 // pred_check
      _
    $region15: #{tpu_custom_call.1} parent=1 // pred_check_branch
      %46 = sbr.rel (0) target = $region17
    $region16: #{tpu_custom_call.1} parent=1 // pred_region
      %s48 = ssub.s32 2048, 2048
      %49 = vsyncadd [#allocation8], %s48
      %s50 = sshll.u32 [#allocation9], 4
      %s51 = int_to_ptr.vmem [resolvable:$true] %s50
      %56 = dma.hbm_to_vmem [thread:$0]  %s3, 2048, %s51, [#allocation8], 128, 128, 8
    $region17: #{tpu_custom_call.1} parent=1 // pred_fallthru
      _
    // Predicated region
    $region18: #{tpu_custom_call.1} parent=1 // pred_check
      _
    $region19: #{tpu_custom_call.1} parent=1 // pred_check_branch
      %58 = sbr.rel (0) target = $region21
    $region20: #{tpu_custom_call.1} parent=1 // pred_region
      %s60 = ssub.s32 2048, 2048
      %61 = vsyncadd [#allocation11], %s60
      %s62 = sshll.u32 [#allocation10], 4
      %s63 = int_to_ptr.vmem [resolvable:$true] %s62
      %68 = dma.hbm_to_vmem [thread:$0]  %s4, 2048, %s63, [#allocation11], 128, 128, 8
    $region21: #{tpu_custom_call.1} parent=1 // pred_fallthru
      _
    // Predicated region
    $region22: #{tpu_custom_call.1} parent=1 // pred_check
      _
    $region23: #{tpu_custom_call.1} parent=1 // pred_check_branch
      %70 = sbr.rel (0) target = $region25
    $region24: #{tpu_custom_call.1} parent=1 // pred_region
      _
    $region25: #{tpu_custom_call.1} parent=1 // pred_fallthru
      _
    // Predicated region
    $region26: #{tpu_custom_call.1} parent=1 // pred_check
      _
    $region27: #{tpu_custom_call.1} parent=1 // pred_check_branch
      %72 = sbr.rel (0) target = $region29
    $region28: #{tpu_custom_call.1} parent=1 // pred_region
      %s74 = ssub.s32 2048, 2048
      %75 = vsyncadd [#allocation11], %s74
      %s76 = sshll.u32 [#allocation12], 4
      %s77 = int_to_ptr.vmem [resolvable:$true] %s76
      %82 = dma.hbm_to_vmem [thread:$0]  %s6, 2048, %s77, [#allocation11], 128, 128, 8
    $region29: #{tpu_custom_call.1} parent=1 // pred_fallthru
      _
    // Predicated region
    $region30: #{tpu_custom_call.1} parent=1 // pred_check
      _
    $region31: #{tpu_custom_call.1} parent=1 // pred_check_branch
      %84 = sbr.rel (0) target = $region33
    $region32: #{tpu_custom_call.1} parent=1 // pred_region
      _
    $region33: #{tpu_custom_call.1} parent=1 // pred_fallthru
      _
    // Predicated region
    $region34: #{tpu_custom_call.1} parent=1 // pred_check
      _
    $region35: #{tpu_custom_call.1} parent=1 // pred_check_branch
      %86 = sbr.rel (0) target = $region37
    $region36: #{tpu_custom_call.1} parent=1 // pred_region
      %87 = dma.done [#allocation5], 1024
    $region37: #{tpu_custom_call.1} parent=1 // pred_fallthru
      _
    // Predicated region
    $region38: #{tpu_custom_call.1} parent=1 // pred_check
      _
    $region39: #{tpu_custom_call.1} parent=1 // pred_check_branch
      %89 = sbr.rel (0) target = $region41
    $region40: #{tpu_custom_call.1} parent=1 // pred_region
      %90 = dma.done [#allocation8], 1024
    $region41: #{tpu_custom_call.1} parent=1 // pred_fallthru
      _
    // Predicated region
    $region42: #{tpu_custom_call.1} parent=1 // pred_check
      _
    $region43: #{tpu_custom_call.1} parent=1 // pred_check_branch
      %92 = sbr.rel (0) target = $region45
    $region44: #{tpu_custom_call.1} parent=1 // pred_region
      %93 = dma.done [#allocation8], 2048
    $region45: #{tpu_custom_call.1} parent=1 // pred_fallthru
      _
    // Predicated region
    $region46: #{tpu_custom_call.1} parent=1 // pred_check
      _
    $region47: #{tpu_custom_call.1} parent=1 // pred_check_branch
      %95 = sbr.rel (0) target = $region49
    $region48: #{tpu_custom_call.1} parent=1 // pred_region
      %96 = dma.done [#allocation11], 2048
    $region49: #{tpu_custom_call.1} parent=1 // pred_fallthru
      _
    // Predicated region
    $region50: #{tpu_custom_call.1} parent=1 // pred_check
      _
    $region51: #{tpu_custom_call.1} parent=1 // pred_check_branch
      %98 = sbr.rel (0) target = $region53
    $region52: #{tpu_custom_call.1} parent=1 // pred_region
      %99 = dma.done [#allocation11], 2048
    $region53: #{tpu_custom_call.1} parent=1 // pred_fallthru
      _
    %p101 = scmp.eq.s32.totalorder 0, 0
    // Predicated region
    $region54: #{tpu_custom_call.1} parent=1 // pred_check
      %p102 = pneg %p101
    $region55: #{tpu_custom_call.1} parent=1 // pred_check_branch
      %104 = sbr.rel (%p102) target = $region57
    $region56: #{tpu_custom_call.1} parent=1 // pred_region
      %105 = vst [vmem:[#allocation2] sm:$0xff] 0.0
      %106 = vst [vmem:[#allocation2 + $0x8] sm:$0xff] 0.0
      %107 = vst [vmem:[#allocation2 + $0x10] sm:$0xff] 0.0
      %108 = vst [vmem:[#allocation2 + $0x18] sm:$0xff] 0.0
      %109 = vst [vmem:[#allocation2 + $0x20] sm:$0xff] 0.0
      %110 = vst [vmem:[#allocation2 + $0x28] sm:$0xff] 0.0
      %111 = vst [vmem:[#allocation2 + $0x30] sm:$0xff] 0.0
      %112 = vst [vmem:[#allocation2 + $0x38] sm:$0xff] 0.0
      %113 = vst [vmem:[#allocation2 + $0x40] sm:$0xff] 0.0
      %114 = vst [vmem:[#allocation2 + $0x48] sm:$0xff] 0.0
      %115 = vst [vmem:[#allocation2 + $0x50] sm:$0xff] 0.0
      %116 = vst [vmem:[#allocation2 + $0x58] sm:$0xff] 0.0
      %117 = vst [vmem:[#allocation2 + $0x60] sm:$0xff] 0.0
      %118 = vst [vmem:[#allocation2 + $0x68] sm:$0xff] 0.0
      %119 = vst [vmem:[#allocation2 + $0x70] sm:$0xff] 0.0
      %120 = vst [vmem:[#allocation2 + $0x78] sm:$0xff] 0.0
    $region57: #{tpu_custom_call.1} parent=1 // pred_fallthru
      _
    %v121 = vld [vmem:[#allocation2] sm:$0xff]
    %v122 = vld [vmem:[#allocation2 + $0x8] sm:$0xff]
    %v123 = vld [vmem:[#allocation2 + $0x10] sm:$0xff]
    %v124 = vld [vmem:[#allocation2 + $0x18] sm:$0xff]
    %v125 = vld [vmem:[#allocation2 + $0x20] sm:$0xff]
    %v126 = vld [vmem:[#allocation2 + $0x28] sm:$0xff]
    %v127 = vld [vmem:[#allocation2 + $0x30] sm:$0xff]
    %v128 = vld [vmem:[#allocation2 + $0x38] sm:$0xff]
    %v129 = vld [vmem:[#allocation2 + $0x40] sm:$0xff]
    %v130 = vld [vmem:[#allocation2 + $0x48] sm:$0xff]
    %v131 = vld [vmem:[#allocation2 + $0x50] sm:$0xff]
    %v132 = vld [vmem:[#allocation2 + $0x58] sm:$0xff]
    %v133 = vld [vmem:[#allocation2 + $0x60] sm:$0xff]
    %v134 = vld [vmem:[#allocation2 + $0x68] sm:$0xff]
    %v135 = vld [vmem:[#allocation2 + $0x70] sm:$0xff]
    %v136 = vld [vmem:[#allocation2 + $0x78] sm:$0xff]
    %v137 = vld [vmem:[#allocation4] sm:$0xf]
    %v138 = vld [vmem:[#allocation4 + $0x4] sm:$0xf]
    %v139 = vld [vmem:[#allocation4 + $0x8] sm:$0xf]
    %v140 = vld [vmem:[#allocation4 + $0xc] sm:$0xf]
    %v141 = vld [vmem:[#allocation4 + $0x10] sm:$0xf]
    %v142 = vld [vmem:[#allocation4 + $0x14] sm:$0xf]
    %v143 = vld [vmem:[#allocation4 + $0x18] sm:$0xf]
    %v144 = vld [vmem:[#allocation4 + $0x1c] sm:$0xf]
    %v145 = vld [vmem:[#allocation4 + $0x20] sm:$0xf]
    %v146 = vld [vmem:[#allocation4 + $0x24] sm:$0xf]
    %v147 = vld [vmem:[#allocation4 + $0x28] sm:$0xf]
    %v148 = vld [vmem:[#allocation4 + $0x2c] sm:$0xf]
    %v149 = vld [vmem:[#allocation4 + $0x30] sm:$0xf]
    %v150 = vld [vmem:[#allocation4 + $0x34] sm:$0xf]
    %v151 = vld [vmem:[#allocation4 + $0x38] sm:$0xf]
    %v152 = vld [vmem:[#allocation4 + $0x3c] sm:$0xf]
    %v153 = vld [vmem:[#allocation7] sm:$0xf]
    %v154 = vld [vmem:[#allocation7 + $0x4] sm:$0xf]
    %v155 = vld [vmem:[#allocation7 + $0x8] sm:$0xf]
    %v156 = vld [vmem:[#allocation7 + $0xc] sm:$0xf]
    %v157 = vld [vmem:[#allocation7 + $0x10] sm:$0xf]
    %v158 = vld [vmem:[#allocation7 + $0x14] sm:$0xf]
    %v159 = vld [vmem:[#allocation7 + $0x18] sm:$0xf]
    %v160 = vld [vmem:[#allocation7 + $0x1c] sm:$0xf]
    %v161 = vld [vmem:[#allocation7 + $0x20] sm:$0xf]
    %v162 = vld [vmem:[#allocation7 + $0x24] sm:$0xf]
    %v163 = vld [vmem:[#allocation7 + $0x28] sm:$0xf]
    %v164 = vld [vmem:[#allocation7 + $0x2c] sm:$0xf]
    %v165 = vld [vmem:[#allocation7 + $0x30] sm:$0xf]
    %v166 = vld [vmem:[#allocation7 + $0x34] sm:$0xf]
    %v167 = vld [vmem:[#allocation7 + $0x38] sm:$0xf]
    %v168 = vld [vmem:[#allocation7 + $0x3c] sm:$0xf]
    %v185 = vunpack.c.l.b16 %v137
    %v186 = vunpack.c.l.b16 %v138
    %v187 = vunpack.c.l.b16 %v139
    %v188 = vunpack.c.l.b16 %v140
    %v189 = vunpack.c.l.b16 %v141
    %v190 = vunpack.c.l.b16 %v142
    %v191 = vunpack.c.l.b16 %v143
    %v192 = vunpack.c.l.b16 %v144
    %v193 = vunpack.c.l.b16 %v145
    %v194 = vunpack.c.l.b16 %v146
    %v195 = vunpack.c.l.b16 %v147
    %v196 = vunpack.c.l.b16 %v148
    %v197 = vunpack.c.l.b16 %v149
    %v198 = vunpack.c.l.b16 %v150
    %v199 = vunpack.c.l.b16 %v151
    %v200 = vunpack.c.l.b16 %v152
    %v201 = vpack.c.b16 %v186, %v185
    %v202 = vpack.c.b16 %v188, %v187
    %v203 = vpack.c.b16 %v190, %v189
    %v204 = vpack.c.b16 %v192, %v191
    %v205 = vpack.c.b16 %v194, %v193
    %v206 = vpack.c.b16 %v196, %v195
    %v207 = vpack.c.b16 %v198, %v197
    %v208 = vpack.c.b16 %v200, %v199
    %v233 = vunpack.c.l.b16 %v153
    %v234 = vunpack.c.l.b16 %v154
    %v235 = vunpack.c.l.b16 %v155
    %v236 = vunpack.c.l.b16 %v156
    %v237 = vunpack.c.l.b16 %v157
    %v238 = vunpack.c.l.b16 %v158
    %v239 = vunpack.c.l.b16 %v159
    %v240 = vunpack.c.l.b16 %v160
    %v241 = vunpack.c.l.b16 %v161
    %v242 = vunpack.c.l.b16 %v162
    %v243 = vunpack.c.l.b16 %v163
    %v244 = vunpack.c.l.b16 %v164
    %v245 = vunpack.c.l.b16 %v165
    %v246 = vunpack.c.l.b16 %v166
    %v247 = vunpack.c.l.b16 %v167
    %v248 = vunpack.c.l.b16 %v168
    %v249 = vpack.c.b16 %v234, %v233
    %v250 = vpack.c.b16 %v236, %v235
    %v251 = vpack.c.b16 %v238, %v237
    %v252 = vpack.c.b16 %v240, %v239
    %v253 = vpack.c.b16 %v242, %v241
    %v254 = vpack.c.b16 %v244, %v243
    %v255 = vpack.c.b16 %v246, %v245
    %v256 = vpack.c.b16 %v248, %v247
    %265 = vmatprep.subr.bf16.mxu0 0
    %266 = vmatpush1.bf16.msra.mxu0 %v249
    %267 = vmatprep.subr.bf16.mxu0 0
    %268 = vmatpush1.bf16.msra.mxu0 %v250
    %269 = vmatprep.subr.bf16.mxu0 0
    %270 = vmatpush1.bf16.msra.mxu0 %v251
    %271 = vmatprep.subr.bf16.mxu0 0
    %272 = vmatpush1.bf16.msra.mxu0 %v252
    %273 = vmatprep.subr.bf16.mxu0 0
    %274 = vmatpush1.bf16.msra.mxu0 %v253
    %275 = vmatprep.subr.bf16.mxu0 0
    %276 = vmatpush1.bf16.msra.mxu0 %v254
    %277 = vmatprep.subr.bf16.mxu0 0
    %278 = vmatpush1.bf16.msra.mxu0 %v255
    %279 = vmatprep.subr.bf16.mxu0 0
    %280 = vmatpush1.bf16.msra.mxu0 %v256
    %281 = vmatprep.subr.bf16.mxu0 0
    %282 = vmatpush1.bf16.msra.mxu0 0
    %283 = vmatprep.subr.bf16.mxu0 0
    %284 = vmatpush1.bf16.msra.mxu0 0
    %285 = vmatprep.subr.bf16.mxu0 0
    %286 = vmatpush1.bf16.msra.mxu0 0
    %287 = vmatprep.subr.bf16.mxu0 0
    %288 = vmatpush1.bf16.msra.mxu0 0
    %289 = vmatprep.subr.bf16.mxu0 0
    %290 = vmatpush1.bf16.msra.mxu0 0
    %291 = vmatprep.subr.bf16.mxu0 0
    %292 = vmatpush1.bf16.msra.mxu0 0
    %293 = vmatprep.subr.bf16.mxu0 0
    %294 = vmatpush1.bf16.msra.mxu0 0
    %295 = vmatprep.subr.bf16.mxu0 0
    %296 = vmatpush1.bf16.msra.mxu0 0
    %297 = vmatprep.mubr.bf16.mxu0 0
    %298 = vmatmul.mubr.bf16.gmra.mrb[0].mxu0 %v201
    %v299 = vpop.f32.mrb[0].mxu0
    %v300 = vadd.f32 0.0, %v299
    %v301 = vpop.f32.mrb[0].mxu0
    %v302 = vpop.f32.mrb[0].mxu0
    %v303 = vadd.f32 0.0, %v302
    %v304 = vpop.f32.mrb[0].mxu0
    %305 = vmatprep.mubr.bf16.mxu0 0
    %306 = vmatmul.mubr.bf16.gmra.mrb[0].mxu0 %v202
    %v307 = vpop.f32.mrb[0].mxu0
    %v308 = vadd.f32 0.0, %v307
    %v309 = vpop.f32.mrb[0].mxu0
    %v310 = vpop.f32.mrb[0].mxu0
    %v311 = vadd.f32 0.0, %v310
    %v312 = vpop.f32.mrb[0].mxu0
    %313 = vmatprep.mubr.bf16.mxu0 0
    %314 = vmatmul.mubr.bf16.gmra.mrb[0].mxu0 %v203
    %v315 = vpop.f32.mrb[0].mxu0
    %v316 = vadd.f32 0.0, %v315
    %v317 = vpop.f32.mrb[0].mxu0
    %v318 = vpop.f32.mrb[0].mxu0
    %v319 = vadd.f32 0.0, %v318
    %v320 = vpop.f32.mrb[0].mxu0
    %321 = vmatprep.mubr.bf16.mxu0 0
    %322 = vmatmul.mubr.bf16.gmra.mrb[0].mxu0 %v204
    %v323 = vpop.f32.mrb[0].mxu0
    %v324 = vadd.f32 0.0, %v323
    %v325 = vpop.f32.mrb[0].mxu0
    %v326 = vpop.f32.mrb[0].mxu0
    %v327 = vadd.f32 0.0, %v326
    %v328 = vpop.f32.mrb[0].mxu0
    %329 = vmatprep.mubr.bf16.mxu0 0
    %330 = vmatmul.mubr.bf16.gmra.mrb[0].mxu0 %v205
    %v331 = vpop.f32.mrb[0].mxu0
    %v332 = vadd.f32 0.0, %v331
    %v333 = vpop.f32.mrb[0].mxu0
    %v334 = vpop.f32.mrb[0].mxu0
    %v335 = vadd.f32 0.0, %v334
    %v336 = vpop.f32.mrb[0].mxu0
    %337 = vmatprep.mubr.bf16.mxu0 0
    %338 = vmatmul.mubr.bf16.gmra.mrb[0].mxu0 %v206
    %v339 = vpop.f32.mrb[0].mxu0
    %v340 = vadd.f32 0.0, %v339
    %v341 = vpop.f32.mrb[0].mxu0
    %v342 = vpop.f32.mrb[0].mxu0
    %v343 = vadd.f32 0.0, %v342
    %v344 = vpop.f32.mrb[0].mxu0
    %345 = vmatprep.mubr.bf16.mxu0 0
    %346 = vmatmul.mubr.bf16.gmra.mrb[0].mxu0 %v207
    %v347 = vpop.f32.mrb[0].mxu0
    %v348 = vadd.f32 0.0, %v347
    %v349 = vpop.f32.mrb[0].mxu0
    %v350 = vpop.f32.mrb[0].mxu0
    %v351 = vadd.f32 0.0, %v350
    %v352 = vpop.f32.mrb[0].mxu0
    %353 = vmatprep.mubr.bf16.mxu0 0
    %354 = vmatmul.mubr.bf16.gmra.mrb[0].mxu0 %v208
    %v355 = vpop.f32.mrb[0].mxu0
    %v356 = vadd.f32 0.0, %v355
    %v357 = vpop.f32.mrb[0].mxu0
    %v358 = vpop.f32.mrb[0].mxu0
    %v359 = vadd.f32 0.0, %v358
    %v360 = vpop.f32.mrb[0].mxu0
    %361 = vdwg.mxu0
    %v362 = vadd.f32 %v121, %v300
    %v363 = vadd.f32 %v122, %v303
    %v364 = vadd.f32 %v123, %v308
    %v365 = vadd.f32 %v124, %v311
    %v366 = vadd.f32 %v125, %v316
    %v367 = vadd.f32 %v126, %v319
    %v368 = vadd.f32 %v127, %v324
    %v369 = vadd.f32 %v128, %v327
    %v370 = vadd.f32 %v129, %v332
    %v371 = vadd.f32 %v130, %v335
    %v372 = vadd.f32 %v131, %v340
    %v373 = vadd.f32 %v132, %v343
    %v374 = vadd.f32 %v133, %v348
    %v375 = vadd.f32 %v134, %v351
    %v376 = vadd.f32 %v135, %v356
    %v377 = vadd.f32 %v136, %v359
    %378 = vst [vmem:[#allocation2] sm:$0xff] %v362
    %379 = vst [vmem:[#allocation2 + $0x8] sm:$0xff] %v363
    %380 = vst [vmem:[#allocation2 + $0x10] sm:$0xff] %v364
    %381 = vst [vmem:[#allocation2 + $0x18] sm:$0xff] %v365
    %382 = vst [vmem:[#allocation2 + $0x20] sm:$0xff] %v366
    %383 = vst [vmem:[#allocation2 + $0x28] sm:$0xff] %v367
    %384 = vst [vmem:[#allocation2 + $0x30] sm:$0xff] %v368
    %385 = vst [vmem:[#allocation2 + $0x38] sm:$0xff] %v369
    %386 = vst [vmem:[#allocation2 + $0x40] sm:$0xff] %v370
    %387 = vst [vmem:[#allocation2 + $0x48] sm:$0xff] %v371
    %388 = vst [vmem:[#allocation2 + $0x50] sm:$0xff] %v372
    %389 = vst [vmem:[#allocation2 + $0x58] sm:$0xff] %v373
    %390 = vst [vmem:[#allocation2 + $0x60] sm:$0xff] %v374
    %391 = vst [vmem:[#allocation2 + $0x68] sm:$0xff] %v375
    %392 = vst [vmem:[#allocation2 + $0x70] sm:$0xff] %v376
    %393 = vst [vmem:[#allocation2 + $0x78] sm:$0xff] %v377
    // Predicated region
    $region58: #{tpu_custom_call.1} parent=1 // pred_check
      %p394 = pneg %p101
    $region59: #{tpu_custom_call.1} parent=1 // pred_check_branch
      %396 = sbr.rel (%p394) target = $region61
    $region60: #{tpu_custom_call.1} parent=1 // pred_region
      %v397 = vld [vmem:[#allocation2] sm:$0xff]
      %v398 = vld [vmem:[#allocation2 + $0x8] sm:$0xff]
      %v399 = vld [vmem:[#allocation2 + $0x10] sm:$0xff]
      %v400 = vld [vmem:[#allocation2 + $0x18] sm:$0xff]
      %v401 = vld [vmem:[#allocation2 + $0x20] sm:$0xff]
      %v402 = vld [vmem:[#allocation2 + $0x28] sm:$0xff]
      %v403 = vld [vmem:[#allocation2 + $0x30] sm:$0xff]
      %v404 = vld [vmem:[#allocation2 + $0x38] sm:$0xff]
      %v405 = vld [vmem:[#allocation2 + $0x40] sm:$0xff]
      %v406 = vld [vmem:[#allocation2 + $0x48] sm:$0xff]
      %v407 = vld [vmem:[#allocation2 + $0x50] sm:$0xff]
      %v408 = vld [vmem:[#allocation2 + $0x58] sm:$0xff]
      %v409 = vld [vmem:[#allocation2 + $0x60] sm:$0xff]
      %v410 = vld [vmem:[#allocation2 + $0x68] sm:$0xff]
      %v411 = vld [vmem:[#allocation2 + $0x70] sm:$0xff]
      %v412 = vld [vmem:[#allocation2 + $0x78] sm:$0xff]
      %v413 = vld [vmem:[#allocation3] sm:$0x1]
      %s414 = vtos %v413
      %s415 = sadd.f32 %s414, 1.0
      %v416 = vld [vmem:[#allocation9] sm:$0xff]
      %v417 = vld [vmem:[#allocation9 + $0x8] sm:$0xff]
      %v418 = vld [vmem:[#allocation9 + $0x10] sm:$0xff]
      %v419 = vld [vmem:[#allocation9 + $0x18] sm:$0xff]
      %v420 = vld [vmem:[#allocation9 + $0x20] sm:$0xff]
      %v421 = vld [vmem:[#allocation9 + $0x28] sm:$0xff]
      %v422 = vld [vmem:[#allocation9 + $0x30] sm:$0xff]
      %v423 = vld [vmem:[#allocation9 + $0x38] sm:$0xff]
      %v424 = vld [vmem:[#allocation9 + $0x40] sm:$0xff]
      %v425 = vld [vmem:[#allocation9 + $0x48] sm:$0xff]
      %v426 = vld [vmem:[#allocation9 + $0x50] sm:$0xff]
      %v427 = vld [vmem:[#allocation9 + $0x58] sm:$0xff]
      %v428 = vld [vmem:[#allocation9 + $0x60] sm:$0xff]
      %v429 = vld [vmem:[#allocation9 + $0x68] sm:$0xff]
      %v430 = vld [vmem:[#allocation9 + $0x70] sm:$0xff]
      %v431 = vld [vmem:[#allocation9 + $0x78] sm:$0xff]
      %v432 = vstv %s415
      %v433 = vmul.f32 %v432, %v416
      %v434 = vmul.f32 %v432, %v417
      %v435 = vmul.f32 %v432, %v418
      %v436 = vmul.f32 %v432, %v419
      %v437 = vmul.f32 %v432, %v420
      %v438 = vmul.f32 %v432, %v421
      %v439 = vmul.f32 %v432, %v422
      %v440 = vmul.f32 %v432, %v423
      %v441 = vmul.f32 %v432, %v424
      %v442 = vmul.f32 %v432, %v425
      %v443 = vmul.f32 %v432, %v426
      %v444 = vmul.f32 %v432, %v427
      %v445 = vmul.f32 %v432, %v428
      %v446 = vmul.f32 %v432, %v429
      %v447 = vmul.f32 %v432, %v430
      %v448 = vmul.f32 %v432, %v431
      %v449 = vadd.f32 %v397, %v433
      %v450 = vadd.f32 %v398, %v434
      %v451 = vadd.f32 %v399, %v435
      %v452 = vadd.f32 %v400, %v436
      %v453 = vadd.f32 %v401, %v437
      %v454 = vadd.f32 %v402, %v438
      %v455 = vadd.f32 %v403, %v439
      %v456 = vadd.f32 %v404, %v440
      %v457 = vadd.f32 %v405, %v441
      %v458 = vadd.f32 %v406, %v442
      %v459 = vadd.f32 %v407, %v443
      %v460 = vadd.f32 %v408, %v444
      %v461 = vadd.f32 %v409, %v445
      %v462 = vadd.f32 %v410, %v446
      %v463 = vadd.f32 %v411, %v447
      %v464 = vadd.f32 %v412, %v448
      %v465 = vld [vmem:[#allocation10] sm:$0xff]
      %v466 = vld [vmem:[#allocation10 + $0x8] sm:$0xff]
      %v467 = vld [vmem:[#allocation10 + $0x10] sm:$0xff]
      %v468 = vld [vmem:[#allocation10 + $0x18] sm:$0xff]
      %v469 = vld [vmem:[#allocation10 + $0x20] sm:$0xff]
      %v470 = vld [vmem:[#allocation10 + $0x28] sm:$0xff]
      %v471 = vld [vmem:[#allocation10 + $0x30] sm:$0xff]
      %v472 = vld [vmem:[#allocation10 + $0x38] sm:$0xff]
      %v473 = vld [vmem:[#allocation10 + $0x40] sm:$0xff]
      %v474 = vld [vmem:[#allocation10 + $0x48] sm:$0xff]
      %v475 = vld [vmem:[#allocation10 + $0x50] sm:$0xff]
      %v476 = vld [vmem:[#allocation10 + $0x58] sm:$0xff]
      %v477 = vld [vmem:[#allocation10 + $0x60] sm:$0xff]
      %v478 = vld [vmem:[#allocation10 + $0x68] sm:$0xff]
      %v479 = vld [vmem:[#allocation10 + $0x70] sm:$0xff]
      %v480 = vld [vmem:[#allocation10 + $0x78] sm:$0xff]
      %v481 = vld [vmem:[%s5] sm:$0x1]
      %v483 = vlaneseq
      %v484 = vshrl.u32 %v483, 7
      %v485 = vsub.s32 0, %v484
      %v486 = vrot.slane %v481, %v485
      %488 = vmatprep.subr.mxu0 0.0
      %489 = vmatpush1.msra.mxu0 %v465
      %490 = vmatprep.subr.mxu0 0.0
      %491 = vmatpush1.msra.mxu0 %v466
      %492 = vmatprep.subr.mxu0 0.0
      %493 = vmatpush1.msra.mxu0 %v467
      %494 = vmatprep.subr.mxu0 0.0
      %495 = vmatpush1.msra.mxu0 %v468
      %496 = vmatprep.subr.mxu0 0.0
      %497 = vmatpush1.msra.mxu0 %v469
      %498 = vmatprep.subr.mxu0 0.0
      %499 = vmatpush1.msra.mxu0 %v470
      %500 = vmatprep.subr.mxu0 0.0
      %501 = vmatpush1.msra.mxu0 %v471
      %502 = vmatprep.subr.mxu0 0.0
      %503 = vmatpush1.msra.mxu0 %v472
      %504 = vmatprep.subr.mxu0 0.0
      %505 = vmatpush1.msra.mxu0 %v473
      %506 = vmatprep.subr.mxu0 0.0
      %507 = vmatpush1.msra.mxu0 %v474
      %508 = vmatprep.subr.mxu0 0.0
      %509 = vmatpush1.msra.mxu0 %v475
      %510 = vmatprep.subr.mxu0 0.0
      %511 = vmatpush1.msra.mxu0 %v476
      %512 = vmatprep.subr.mxu0 0.0
      %513 = vmatpush1.msra.mxu0 %v477
      %514 = vmatprep.subr.mxu0 0.0
      %515 = vmatpush1.msra.mxu0 %v478
      %516 = vmatprep.subr.mxu0 0.0
      %517 = vmatpush1.msra.mxu0 %v479
      %518 = vmatprep.subr.mxu0 0.0
      %519 = vmatpush1.msra.mxu0 %v480
      %520 = vmatprep.subr.mxu0 0.0
      %521 = vmatpush1.msra.mxu0 0.0
      %522 = vmatprep.subr.mxu0 0.0
      %523 = vmatpush1.msra.mxu0 0.0
      %524 = vmatprep.subr.mxu0 0.0
      %525 = vmatpush1.msra.mxu0 0.0
      %526 = vmatprep.subr.mxu0 0.0
      %527 = vmatpush1.msra.mxu0 0.0
      %528 = vmatprep.subr.mxu0 0.0
      %529 = vmatpush1.msra.mxu0 0.0
      %530 = vmatprep.subr.mxu0 0.0
      %531 = vmatpush1.msra.mxu0 0.0
      %532 = vmatprep.subr.mxu0 0.0
      %533 = vmatpush1.msra.mxu0 0.0
      %534 = vmatprep.subr.mxu0 0.0
      %535 = vmatpush1.msra.mxu0 0.0
      %536 = vmatprep.subr.mxu0 0.0
      %537 = vmatpush1.msra.mxu0 0.0
      %538 = vmatprep.subr.mxu0 0.0
      %539 = vmatpush1.msra.mxu0 0.0
      %540 = vmatprep.subr.mxu0 0.0
      %541 = vmatpush1.msra.mxu0 0.0
      %542 = vmatprep.subr.mxu0 0.0
      %543 = vmatpush1.msra.mxu0 0.0
      %544 = vmatprep.subr.mxu0 0.0
      %545 = vmatpush1.msra.mxu0 0.0
      %546 = vmatprep.subr.mxu0 0.0
      %547 = vmatpush1.msra.mxu0 0.0
      %548 = vmatprep.subr.mxu0 0.0
      %549 = vmatpush1.msra.mxu0 0.0
      %550 = vmatprep.subr.mxu0 0.0
      %551 = vmatpush1.msra.mxu0 0.0
      %552 = vmatprep.mubr.f32.mxu0 0.0
      %553 = vmatmul.mubr.f32.gmra.mrb[0].mxu0 %v449
      %v554 = vpop.f32.mrb[0].mxu0
      %v555 = vadd.f32 %v486, %v554
      %v556 = vpop.f32.mrb[0].mxu0
      %557 = vmatprep.mubr.f32.mxu0 0.0
      %558 = vmatmul.mubr.f32.gmra.mrb[0].mxu0 %v450
      %v559 = vpop.f32.mrb[0].mxu0
      %v560 = vadd.f32 %v486, %v559
      %v561 = vpop.f32.mrb[0].mxu0
      %562 = vmatprep.mubr.f32.mxu0 0.0
      %563 = vmatmul.mubr.f32.gmra.mrb[0].mxu0 %v451
      %v564 = vpop.f32.mrb[0].mxu0
      %v565 = vadd.f32 %v486, %v564
      %v566 = vpop.f32.mrb[0].mxu0
      %567 = vmatprep.mubr.f32.mxu0 0.0
      %568 = vmatmul.mubr.f32.gmra.mrb[0].mxu0 %v452
      %v569 = vpop.f32.mrb[0].mxu0
      %v570 = vadd.f32 %v486, %v569
      %v571 = vpop.f32.mrb[0].mxu0
      %572 = vmatprep.mubr.f32.mxu0 0.0
      %573 = vmatmul.mubr.f32.gmra.mrb[0].mxu0 %v453
      %v574 = vpop.f32.mrb[0].mxu0
      %v575 = vadd.f32 %v486, %v574
      %v576 = vpop.f32.mrb[0].mxu0
      %577 = vmatprep.mubr.f32.mxu0 0.0
      %578 = vmatmul.mubr.f32.gmra.mrb[0].mxu0 %v454
      %v579 = vpop.f32.mrb[0].mxu0
      %v580 = vadd.f32 %v486, %v579
      %v581 = vpop.f32.mrb[0].mxu0
      %582 = vmatprep.mubr.f32.mxu0 0.0
      %583 = vmatmul.mubr.f32.gmra.mrb[0].mxu0 %v455
      %v584 = vpop.f32.mrb[0].mxu0
      %v585 = vadd.f32 %v486, %v584
      %v586 = vpop.f32.mrb[0].mxu0
      %587 = vmatprep.mubr.f32.mxu0 0.0
      %588 = vmatmul.mubr.f32.gmra.mrb[0].mxu0 %v456
      %v589 = vpop.f32.mrb[0].mxu0
      %v590 = vadd.f32 %v486, %v589
      %v591 = vpop.f32.mrb[0].mxu0
      %592 = vmatprep.mubr.f32.mxu0 0.0
      %593 = vmatmul.mubr.f32.gmra.mrb[0].mxu0 %v457
      %v594 = vpop.f32.mrb[0].mxu0
      %v595 = vadd.f32 %v486, %v594
      %v596 = vpop.f32.mrb[0].mxu0
      %597 = vmatprep.mubr.f32.mxu0 0.0
      %598 = vmatmul.mubr.f32.gmra.mrb[0].mxu0 %v458
      %v599 = vpop.f32.mrb[0].mxu0
      %v600 = vadd.f32 %v486, %v599
      %v601 = vpop.f32.mrb[0].mxu0
      %602 = vmatprep.mubr.f32.mxu0 0.0
      %603 = vmatmul.mubr.f32.gmra.mrb[0].mxu0 %v459
      %v604 = vpop.f32.mrb[0].mxu0
      %v605 = vadd.f32 %v486, %v604
      %v606 = vpop.f32.mrb[0].mxu0
      %607 = vmatprep.mubr.f32.mxu0 0.0
      %608 = vmatmul.mubr.f32.gmra.mrb[0].mxu0 %v460
      %v609 = vpop.f32.mrb[0].mxu0
      %v610 = vadd.f32 %v486, %v609
      %v611 = vpop.f32.mrb[0].mxu0
      %612 = vmatprep.mubr.f32.mxu0 0.0
      %613 = vmatmul.mubr.f32.gmra.mrb[0].mxu0 %v461
      %v614 = vpop.f32.mrb[0].mxu0
      %v615 = vadd.f32 %v486, %v614
      %v616 = vpop.f32.mrb[0].mxu0
      %617 = vmatprep.mubr.f32.mxu0 0.0
      %618 = vmatmul.mubr.f32.gmra.mrb[0].mxu0 %v462
      %v619 = vpop.f32.mrb[0].mxu0
      %v620 = vadd.f32 %v486, %v619
      %v621 = vpop.f32.mrb[0].mxu0
      %622 = vmatprep.mubr.f32.mxu0 0.0
      %623 = vmatmul.mubr.f32.gmra.mrb[0].mxu0 %v463
      %v624 = vpop.f32.mrb[0].mxu0
      %v625 = vadd.f32 %v486, %v624
      %v626 = vpop.f32.mrb[0].mxu0
      %627 = vmatprep.mubr.f32.mxu0 0.0
      %628 = vmatmul.mubr.f32.gmra.mrb[0].mxu0 %v464
      %v629 = vpop.f32.mrb[0].mxu0
      %v630 = vadd.f32 %v486, %v629
      %v631 = vpop.f32.mrb[0].mxu0
      %632 = vdwg.mxu0
      %v633 = vmax.f32 %v555, 0.0
      %v634 = vmax.f32 %v560, 0.0
      %v635 = vmax.f32 %v565, 0.0
      %v636 = vmax.f32 %v570, 0.0
      %v637 = vmax.f32 %v575, 0.0
      %v638 = vmax.f32 %v580, 0.0
      %v639 = vmax.f32 %v585, 0.0
      %v640 = vmax.f32 %v590, 0.0
      %v641 = vmax.f32 %v595, 0.0
      %v642 = vmax.f32 %v600, 0.0
      %v643 = vmax.f32 %v605, 0.0
      %v644 = vmax.f32 %v610, 0.0
      %v645 = vmax.f32 %v615, 0.0
      %v646 = vmax.f32 %v620, 0.0
      %v647 = vmax.f32 %v625, 0.0
      %v648 = vmax.f32 %v630, 0.0
      %v649 = vld [vmem:[#allocation12] sm:$0xff]
      %v650 = vld [vmem:[#allocation12 + $0x8] sm:$0xff]
      %v651 = vld [vmem:[#allocation12 + $0x10] sm:$0xff]
      %v652 = vld [vmem:[#allocation12 + $0x18] sm:$0xff]
      %v653 = vld [vmem:[#allocation12 + $0x20] sm:$0xff]
      %v654 = vld [vmem:[#allocation12 + $0x28] sm:$0xff]
      %v655 = vld [vmem:[#allocation12 + $0x30] sm:$0xff]
      %v656 = vld [vmem:[#allocation12 + $0x38] sm:$0xff]
      %v657 = vld [vmem:[#allocation12 + $0x40] sm:$0xff]
      %v658 = vld [vmem:[#allocation12 + $0x48] sm:$0xff]
      %v659 = vld [vmem:[#allocation12 + $0x50] sm:$0xff]
      %v660 = vld [vmem:[#allocation12 + $0x58] sm:$0xff]
      %v661 = vld [vmem:[#allocation12 + $0x60] sm:$0xff]
      %v662 = vld [vmem:[#allocation12 + $0x68] sm:$0xff]
      %v663 = vld [vmem:[#allocation12 + $0x70] sm:$0xff]
      %v664 = vld [vmem:[#allocation12 + $0x78] sm:$0xff]
      %v665 = vld [vmem:[%s7] sm:$0x1]
      %v667 = vlaneseq
      %v668 = vshrl.u32 %v667, 7
      %v669 = vsub.s32 0, %v668
      %v670 = vrot.slane %v665, %v669
      %672 = vmatprep.subr.mxu0 0.0
      %673 = vmatpush1.msra.mxu0 %v649
      %674 = vmatprep.subr.mxu0 0.0
      %675 = vmatpush1.msra.mxu0 %v650
      %676 = vmatprep.subr.mxu0 0.0
      %677 = vmatpush1.msra.mxu0 %v651
      %678 = vmatprep.subr.mxu0 0.0
      %679 = vmatpush1.msra.mxu0 %v652
      %680 = vmatprep.subr.mxu0 0.0
      %681 = vmatpush1.msra.mxu0 %v653
      %682 = vmatprep.subr.mxu0 0.0
      %683 = vmatpush1.msra.mxu0 %v654
      %684 = vmatprep.subr.mxu0 0.0
      %685 = vmatpush1.msra.mxu0 %v655
      %686 = vmatprep.subr.mxu0 0.0
      %687 = vmatpush1.msra.mxu0 %v656
      %688 = vmatprep.subr.mxu0 0.0
      %689 = vmatpush1.msra.mxu0 %v657
      %690 = vmatprep.subr.mxu0 0.0
      %691 = vmatpush1.msra.mxu0 %v658
      %692 = vmatprep.subr.mxu0 0.0
      %693 = vmatpush1.msra.mxu0 %v659
      %694 = vmatprep.subr.mxu0 0.0
      %695 = vmatpush1.msra.mxu0 %v660
      %696 = vmatprep.subr.mxu0 0.0
      %697 = vmatpush1.msra.mxu0 %v661
      %698 = vmatprep.subr.mxu0 0.0
      %699 = vmatpush1.msra.mxu0 %v662
      %700 = vmatprep.subr.mxu0 0.0
      %701 = vmatpush1.msra.mxu0 %v663
      %702 = vmatprep.subr.mxu0 0.0
      %703 = vmatpush1.msra.mxu0 %v664
      %704 = vmatprep.subr.mxu0 0.0
      %705 = vmatpush1.msra.mxu0 0.0
      %706 = vmatprep.subr.mxu0 0.0
      %707 = vmatpush1.msra.mxu0 0.0
      %708 = vmatprep.subr.mxu0 0.0
      %709 = vmatpush1.msra.mxu0 0.0
      %710 = vmatprep.subr.mxu0 0.0
      %711 = vmatpush1.msra.mxu0 0.0
      %712 = vmatprep.subr.mxu0 0.0
      %713 = vmatpush1.msra.mxu0 0.0
      %714 = vmatprep.subr.mxu0 0.0
      %715 = vmatpush1.msra.mxu0 0.0
      %716 = vmatprep.subr.mxu0 0.0
      %717 = vmatpush1.msra.mxu0 0.0
      %718 = vmatprep.subr.mxu0 0.0
      %719 = vmatpush1.msra.mxu0 0.0
      %720 = vmatprep.subr.mxu0 0.0
      %721 = vmatpush1.msra.mxu0 0.0
      %722 = vmatprep.subr.mxu0 0.0
      %723 = vmatpush1.msra.mxu0 0.0
      %724 = vmatprep.subr.mxu0 0.0
      %725 = vmatpush1.msra.mxu0 0.0
      %726 = vmatprep.subr.mxu0 0.0
      %727 = vmatpush1.msra.mxu0 0.0
      %728 = vmatprep.subr.mxu0 0.0
      %729 = vmatpush1.msra.mxu0 0.0
      %730 = vmatprep.subr.mxu0 0.0
      %731 = vmatpush1.msra.mxu0 0.0
      %732 = vmatprep.subr.mxu0 0.0
      %733 = vmatpush1.msra.mxu0 0.0
      %734 = vmatprep.subr.mxu0 0.0
      %735 = vmatpush1.msra.mxu0 0.0
      %736 = vmatprep.mubr.f32.mxu0 0.0
      %737 = vmatmul.mubr.f32.gmra.mrb[0].mxu0 %v633
      %v738 = vpop.f32.mrb[0].mxu0
      %v739 = vadd.f32 %v670, %v738
      %v740 = vpop.f32.mrb[0].mxu0
      %741 = vmatprep.mubr.f32.mxu0 0.0
      %742 = vmatmul.mubr.f32.gmra.mrb[0].mxu0 %v634
      %v743 = vpop.f32.mrb[0].mxu0
      %v744 = vadd.f32 %v670, %v743
      %v745 = vpop.f32.mrb[0].mxu0
      %746 = vmatprep.mubr.f32.mxu0 0.0
      %747 = vmatmul.mubr.f32.gmra.mrb[0].mxu0 %v635
      %v748 = vpop.f32.mrb[0].mxu0
      %v749 = vadd.f32 %v670, %v748
      %v750 = vpop.f32.mrb[0].mxu0
      %751 = vmatprep.mubr.f32.mxu0 0.0
      %752 = vmatmul.mubr.f32.gmra.mrb[0].mxu0 %v636
      %v753 = vpop.f32.mrb[0].mxu0
      %v754 = vadd.f32 %v670, %v753
      %v755 = vpop.f32.mrb[0].mxu0
      %756 = vmatprep.mubr.f32.mxu0 0.0
      %757 = vmatmul.mubr.f32.gmra.mrb[0].mxu0 %v637
      %v758 = vpop.f32.mrb[0].mxu0
      %v759 = vadd.f32 %v670, %v758
      %v760 = vpop.f32.mrb[0].mxu0
      %761 = vmatprep.mubr.f32.mxu0 0.0
      %762 = vmatmul.mubr.f32.gmra.mrb[0].mxu0 %v638
      %v763 = vpop.f32.mrb[0].mxu0
      %v764 = vadd.f32 %v670, %v763
      %v765 = vpop.f32.mrb[0].mxu0
      %766 = vmatprep.mubr.f32.mxu0 0.0
      %767 = vmatmul.mubr.f32.gmra.mrb[0].mxu0 %v639
      %v768 = vpop.f32.mrb[0].mxu0
      %v769 = vadd.f32 %v670, %v768
      %v770 = vpop.f32.mrb[0].mxu0
      %771 = vmatprep.mubr.f32.mxu0 0.0
      %772 = vmatmul.mubr.f32.gmra.mrb[0].mxu0 %v640
      %v773 = vpop.f32.mrb[0].mxu0
      %v774 = vadd.f32 %v670, %v773
      %v775 = vpop.f32.mrb[0].mxu0
      %776 = vmatprep.mubr.f32.mxu0 0.0
      %777 = vmatmul.mubr.f32.gmra.mrb[0].mxu0 %v641
      %v778 = vpop.f32.mrb[0].mxu0
      %v779 = vadd.f32 %v670, %v778
      %v780 = vpop.f32.mrb[0].mxu0
      %781 = vmatprep.mubr.f32.mxu0 0.0
      %782 = vmatmul.mubr.f32.gmra.mrb[0].mxu0 %v642
      %v783 = vpop.f32.mrb[0].mxu0
      %v784 = vadd.f32 %v670, %v783
      %v785 = vpop.f32.mrb[0].mxu0
      %786 = vmatprep.mubr.f32.mxu0 0.0
      %787 = vmatmul.mubr.f32.gmra.mrb[0].mxu0 %v643
      %v788 = vpop.f32.mrb[0].mxu0
      %v789 = vadd.f32 %v670, %v788
      %v790 = vpop.f32.mrb[0].mxu0
      %791 = vmatprep.mubr.f32.mxu0 0.0
      %792 = vmatmul.mubr.f32.gmra.mrb[0].mxu0 %v644
      %v793 = vpop.f32.mrb[0].mxu0
      %v794 = vadd.f32 %v670, %v793
      %v795 = vpop.f32.mrb[0].mxu0
      %796 = vmatprep.mubr.f32.mxu0 0.0
      %797 = vmatmul.mubr.f32.gmra.mrb[0].mxu0 %v645
      %v798 = vpop.f32.mrb[0].mxu0
      %v799 = vadd.f32 %v670, %v798
      %v800 = vpop.f32.mrb[0].mxu0
      %801 = vmatprep.mubr.f32.mxu0 0.0
      %802 = vmatmul.mubr.f32.gmra.mrb[0].mxu0 %v646
      %v803 = vpop.f32.mrb[0].mxu0
      %v804 = vadd.f32 %v670, %v803
      %v805 = vpop.f32.mrb[0].mxu0
      %806 = vmatprep.mubr.f32.mxu0 0.0
      %807 = vmatmul.mubr.f32.gmra.mrb[0].mxu0 %v647
      %v808 = vpop.f32.mrb[0].mxu0
      %v809 = vadd.f32 %v670, %v808
      %v810 = vpop.f32.mrb[0].mxu0
      %811 = vmatprep.mubr.f32.mxu0 0.0
      %812 = vmatmul.mubr.f32.gmra.mrb[0].mxu0 %v648
      %v813 = vpop.f32.mrb[0].mxu0
      %v814 = vadd.f32 %v670, %v813
      %v815 = vpop.f32.mrb[0].mxu0
      %816 = vdwg.mxu0
      %v817 = vmax.f32 %v739, 0.0
      %v818 = vmax.f32 %v744, 0.0
      %v819 = vmax.f32 %v749, 0.0
      %v820 = vmax.f32 %v754, 0.0
      %v821 = vmax.f32 %v759, 0.0
      %v822 = vmax.f32 %v764, 0.0
      %v823 = vmax.f32 %v769, 0.0
      %v824 = vmax.f32 %v774, 0.0
      %v825 = vmax.f32 %v779, 0.0
      %v826 = vmax.f32 %v784, 0.0
      %v827 = vmax.f32 %v789, 0.0
      %v828 = vmax.f32 %v794, 0.0
      %v829 = vmax.f32 %v799, 0.0
      %v830 = vmax.f32 %v804, 0.0
      %v831 = vmax.f32 %v809, 0.0
      %v832 = vmax.f32 %v814, 0.0
      %833 = vst [vmem:[#allocation13] sm:$0xff] %v817
      %834 = vst [vmem:[#allocation13 + $0x8] sm:$0xff] %v818
      %835 = vst [vmem:[#allocation13 + $0x10] sm:$0xff] %v819
      %836 = vst [vmem:[#allocation13 + $0x18] sm:$0xff] %v820
      %837 = vst [vmem:[#allocation13 + $0x20] sm:$0xff] %v821
      %838 = vst [vmem:[#allocation13 + $0x28] sm:$0xff] %v822
      %839 = vst [vmem:[#allocation13 + $0x30] sm:$0xff] %v823
      %840 = vst [vmem:[#allocation13 + $0x38] sm:$0xff] %v824
      %841 = vst [vmem:[#allocation13 + $0x40] sm:$0xff] %v825
      %842 = vst [vmem:[#allocation13 + $0x48] sm:$0xff] %v826
      %843 = vst [vmem:[#allocation13 + $0x50] sm:$0xff] %v827
      %844 = vst [vmem:[#allocation13 + $0x58] sm:$0xff] %v828
      %845 = vst [vmem:[#allocation13 + $0x60] sm:$0xff] %v829
      %846 = vst [vmem:[#allocation13 + $0x68] sm:$0xff] %v830
      %847 = vst [vmem:[#allocation13 + $0x70] sm:$0xff] %v831
      %848 = vst [vmem:[#allocation13 + $0x78] sm:$0xff] %v832
    $region61: #{tpu_custom_call.1} parent=1 // pred_fallthru
      _
    // Predicated region
    $region62: #{tpu_custom_call.1} parent=1 // pred_check
      _
    $region63: #{tpu_custom_call.1} parent=1 // pred_check_branch
      %850 = sbr.rel (0) target = $region65
    $region64: #{tpu_custom_call.1} parent=1 // pred_region
      %s852 = ssub.s32 2048, 2048
      %853 = vsyncadd [#allocation6], %s852
      %s854 = sshll.u32 [#allocation13], 4
      %s855 = int_to_ptr.vmem [resolvable:$true] %s854
      %860 = dma.vmem_to_hbm [thread:$0]  %s855, 2048, %s8, [#allocation6], 128, 128, 8
    $region65: #{tpu_custom_call.1} parent=1 // pred_fallthru
      _
    // Predicated region
    $region66: #{tpu_custom_call.1} parent=1 // pred_check
      _
    $region67: #{tpu_custom_call.1} parent=1 // pred_check_branch
      %862 = sbr.rel (0) target = $region69
    $region68: #{tpu_custom_call.1} parent=1 // pred_region
      %863 = dma.done [#allocation6], 2048
    $region69: #{tpu_custom_call.1} parent=1 // pred_fallthru
      _
    %864 = vsyncpa [#allocation5], 1
    %865 = vsyncpa [#allocation8], 1
    %866 = vsyncpa [#allocation11], 1
    %867 = vsyncpa [#allocation6], 1

</llo_original>
